<compile_context>
chip_gen: v7x
topology: tpu7x:2x2x1
jax: 0.10.0
libtpu: 0.0.40
codegen_flags: <defaults>
</compile_context>

<pallas_src>
import math

import jax
import jax.numpy as jnp
from jax.experimental import pallas as pl
from jax.experimental.pallas import tpu as pltpu

_LANE = 128
_HEADROOM_BYTES = 4 * 1024 * 1024            # mosaic internal scratch / misc
_NARROW_C_MAX_BLOCK_BYTES = 8 * 1024 * 1024  # cap for the full-extent-C fallback path


def _ew_linear_kernel(wb_ref, x_ref, o_ref):
    # wb_ref: (2, tile_c)  row 0 = w, row 1 = b (lane-chunk of the full width)
    # x_ref / o_ref: (tile_rows, tile_c)
    # Ragged last tiles (rows or lanes) read garbage and the out-of-bounds part of
    # the store is discarded by Pallas -- harmless for an elementwise FMA on TPU.
    o_ref[...] = x_ref[...] * wb_ref[0:1, :] + wb_ref[1:2, :]


def _cdiv(a, b):
    return -(-a // b)


def _round_up(a, b):
    return _cdiv(a, b) * b


def _sublane_pack(dtype) -> int:
    # 8 for f32, 16 for bf16/f16, 32 for int8/fp8 (sub-32-bit packs along sublanes)
    itemsize = jnp.dtype(dtype).itemsize
    return max(8, 32 // max(itemsize, 1))


def _device_kind() -> str:
    try:
        return jax.devices()[0].device_kind.lower()
    except Exception:
        return ""


def _gen_params(kind):
    """Returns (tile_bytes_target, min_row_steps, xla_dispatch_threshold_bytes)."""
    two_tc = ("v7" in kind) or ("v4" in kind) or ("v5p" in kind)
    if "v7" in kind:
        # ~3.2 TB/s HBM: a 2 MiB tile streams in ~1.3 us, so the ~0.35 us/step
        # pipeline overhead matters; use bigger tiles and a bigger XLA cutoff.
        return 6 * 1024 * 1024, 8, 8 << 20
    if two_tc:
        return 2 * 1024 * 1024, 8, 2 << 20
    # v5e / v6e (single TC): measured roofline plateaus ~85% with ~2 MiB tiles.
    return 2 * 1024 * 1024, 2, 2 << 20


def _choose_tiles(rows, width, dbytes, sub, tile_bytes, min_row_steps):
    """Pick (tile_rows, tile_c) for a (rows, width) array."""
    # Lane-axis tile: only split if width is a multiple of 128 (stays lane-dense)
    # and one sublane-group row of the full width already blows the tile budget.
    if width % _LANE == 0 and sub * width * dbytes > tile_bytes:
        tile_c = max(_LANE, (tile_bytes // (sub * dbytes)) // _LANE * _LANE)
    else:
        tile_c = width
    # Row tile from the remaining budget.
    max_rows = max(sub, (tile_bytes // (tile_c * dbytes)) // sub * sub)
    if rows <= sub:
        tile_rows = rows                       # single full-extent block (legal)
    else:
        # Keep roughly >= min_row_steps row steps so "parallel" can shard the row
        # axis across both TensorCores on 2-TC parts, never below a sublane group.
        want = _round_up(_cdiv(rows, min_row_steps), sub)
        tile_rows = min(max_rows, max(sub, want))
    return tile_rows, tile_c


def _launch(xg, wb, tile_rows, tile_c):
    rows, width = xg.shape
    dbytes = jnp.dtype(xg.dtype).itemsize
    grid = (pl.cdiv(rows, tile_rows), pl.cdiv(width, tile_c))

    block_bytes = tile_rows * tile_c * dbytes
    # 2x double-buffered x + 2x double-buffered out + double-buffered wb + headroom.
    vmem_limit = int(4 * block_bytes + 4 * tile_c * dbytes + _HEADROOM_BYTES)

    return pl.pallas_call(
        _ew_linear_kernel,
        out_shape=jax.ShapeDtypeStruct((rows, width), xg.dtype),
        grid_spec=pltpu.PrefetchScalarGridSpec(
            num_scalar_prefetch=0,
            grid=grid,
            in_specs=[
                pl.BlockSpec((2, tile_c), lambda i, j: (0, j)),          # fused w/b
                pl.BlockSpec((tile_rows, tile_c), lambda i, j: (i, j)),  # x tile
            ],
            out_specs=pl.BlockSpec((tile_rows, tile_c), lambda i, j: (i, j)),
        ),
        compiler_params=pltpu.CompilerParams(
            dimension_semantics=("parallel", "parallel"),
            vmem_limit_bytes=vmem_limit,
        ),
    )(wb, xg)


def elementwise_linear(x, w, b, *, use_pallas=None):
    """y = w * x + b with w, b of shape (C,) and x of shape (..., C)."""
    orig_shape = x.shape
    C = orig_shape[-1]
    assert w.shape == (C,) and b.shape == (C,)

    # Match the PyTorch module (params and activations are the same float dtype).
    w = w.astype(x.dtype)
    b = b.astype(x.dtype)

    dbytes = jnp.dtype(x.dtype).itemsize
    kind = _device_kind()
    tile_bytes, min_row_steps, dispatch_bytes = _gen_params(kind)

    if use_pallas is None:
        use_pallas = (x.size * dbytes) >= dispatch_bytes
    if not use_pallas or x.size == 0:
        # Small problems: a fused XLA elementwise beats pallas_call launch overhead.
        return w * x + b

    sub = _sublane_pack(x.dtype)
    x2d = x.reshape(-1, C)                 # pure view (row-major contiguous)
    R = x2d.shape[0]

    # Smallest group of rows whose combined width is a multiple of 128 lanes.
    pack = 1 if C % _LANE == 0 else _LANE // math.gcd(C, _LANE)

    if R % pack == 0:
        # Lane-dense path: view `pack` consecutive rows as one kernel row.
        # Pure metadata reshape -- no extra HBM pass, unmasked full-lane stores.
        rows, width = R // pack, C * pack
        xg = x2d.reshape(rows, width)
        wb = jnp.stack([jnp.tile(w, pack), jnp.tile(b, pack)], axis=0)   # (2, width)
    else:
        # Unaligned row count with a non-128-multiple C: keep zero wrapper copies
        # by running directly on (R, C) with a full-extent lane dim and a ragged
        # last row tile. Slightly lane-wasteful but strictly cheaper than the
        # pad + output-slice alternative (each of those is a full extra HBM pass).
        if sub * C * dbytes > _NARROW_C_MAX_BLOCK_BYTES:
            # TODO(synk): very wide non-128-aligned C with unaligned row count would
            # need a masked/BoundedSlice lane split; fall back to fused XLA instead.
            return w * x + b
        rows, width = R, C
        xg = x2d
        wb = jnp.stack([w, b], axis=0)                                    # (2, C)

    tile_rows, tile_c = _choose_tiles(rows, width, dbytes, sub, tile_bytes,
                                      min_row_steps)
    out = _launch(xg, wb, tile_rows, tile_c)

    return out.reshape(orig_shape)         # pure view back to the caller's shape


if __name__ == "__main__":
    key = jax.random.PRNGKey(0)
    k_x, k_w, k_b = jax.random.split(key, 3)

    B, N, C = 2, 8, 32  # batch=2, seq=8, in_channel=32
    x = jax.random.normal(k_x, (B, N, C), dtype=jnp.float32)
    w = jax.random.normal(k_w, (C,), dtype=jnp.float32)
    b = jax.random.normal(k_b, (C,), dtype=jnp.float32)

    # Force the Pallas path for the demo (auto-dispatch would pick fused XLA here).
    y = elementwise_linear(x, w, b, use_pallas=True)
    jax.block_until_ready(y)
    y_ref = w * x + b
    assert jnp.allclose(y, y_ref, atol=1e-6, rtol=1e-6), "mismatch vs reference"

    # Also exercise the zero-copy unaligned-row (narrow-lane, ragged-tile) path.
    x2 = jax.random.normal(k_x, (3, 5, C), dtype=jnp.float32)  # 15 rows, pack=4
    y2 = elementwise_linear(x2, w, b, use_pallas=True)
    jax.block_until_ready(y2)
    assert jnp.allclose(y2, w * x2 + b, atol=1e-6, rtol=1e-6), "mismatch (ragged path)"

    print("KERNEL_OK")
</pallas_src>

<mosaic_0001>
module attributes {stable_mosaic.version = 11 : i64} {
  func.func @_ew_linear_kernel(%arg0: i32, %arg1: i32, %arg2: memref<2x128xf32, #tpu.memory_space<vmem>>, %arg3: memref<4x128xf32, #tpu.memory_space<vmem>>, %arg4: memref<4x128xf32, #tpu.memory_space<vmem>>) attributes {dimension_semantics = [#tpu.dimension_semantics<parallel>, #tpu.dimension_semantics<parallel>], iteration_bounds = array<i64: 1, 1>, scalar_prefetch = 0 : i64, scratch_operands = 0 : i64, tpu.core_type = #tpu.core_type<tc>, window_params = [{transform_indices = @transform_0, window_bounds = array<i64: 2, 128>}, {transform_indices = @transform_1, window_bounds = array<i64: 4, 128>}, {transform_indices = @transform_2, window_bounds = array<i64: 4, 128>}]} {
    %c0 = arith.constant 0 : index
    %c0_0 = arith.constant 0 : index
    %0 = vector.load %arg3[%c0, %c0_0] : memref<4x128xf32, #tpu.memory_space<vmem>>, vector<4x128xf32>
    %c0_1 = arith.constant 0 : index
    %c0_2 = arith.constant 0 : index
    %1 = vector.load %arg2[%c0_1, %c0_2] : memref<2x128xf32, #tpu.memory_space<vmem>>, vector<1x128xf32>
    %2 = vector.broadcast %1 : vector<1x128xf32> to vector<4x128xf32>
    %3 = arith.mulf %0, %2 : vector<4x128xf32>
    %c1 = arith.constant 1 : index
    %c0_3 = arith.constant 0 : index
    %4 = vector.load %arg2[%c1, %c0_3] : memref<2x128xf32, #tpu.memory_space<vmem>>, vector<1x128xf32>
    %5 = vector.broadcast %4 : vector<1x128xf32> to vector<4x128xf32>
    %6 = arith.addf %3, %5 : vector<4x128xf32>
    %c0_4 = arith.constant 0 : index
    %c0_5 = arith.constant 0 : index
    %7 = vector.load %arg4[%c0_4, %c0_5] : memref<4x128xf32, #tpu.memory_space<vmem>>, vector<4x128xf32>
    tpu.vector_store %arg4[%c0_4, %c0_5], %6 {strides = array<i32>} : memref<4x128xf32, #tpu.memory_space<vmem>>, vector<4x128xf32>,
    return
  }
  func.func @transform_0(%arg0: i32, %arg1: i32) -> (i32, i32) {
    %c0_i32 = arith.constant 0 : i32
    %c0_i32_0 = arith.constant 0 : i32
    return %c0_i32, %arg1 : i32, i32
  }
  func.func @transform_1(%arg0: i32, %arg1: i32) -> (i32, i32) {
    %c0_i32 = arith.constant 0 : i32
    return %arg0, %arg1 : i32, i32
  }
  func.func @transform_2(%arg0: i32, %arg1: i32) -> (i32, i32) {
    %c0_i32 = arith.constant 0 : i32
    return %arg0, %arg1 : i32, i32
  }
}

</mosaic_0001>

<llo_original>
// kernel: tpu_custom_call.1
$region0: #{tpu_custom_call.1}
  #allocation0 [shape = 'u32[]', space=smem, size = 0x4, offset = 0x4, fixed_abs, tag = 'smem constant byte address 0x4 - core index']
  #allocation1 [shape = 'u32[144,128]{1,0:T(1,128)}', space=vmem, size = 0x12000, scoped, tag = 'internal scratch']
  %s0 = inlined_call_operand.hbm [shape: f32[2,128], index: 0, kind: input, shape index: {}]
  %s1 = inlined_call_operand.hbm [shape: f32[4,128], index: 1, kind: input, shape index: {}]
  %s2 = inlined_call_operand.hbm [shape: f32[4,128], index: 2, kind: output, shape index: {}]
  %s3 = sld [smem:[#allocation0]]
  $region26: #{tpu_custom_call.1} parent=0
    _
  %s5 = ssub.s32 1, %s3
  %s6 = scalar_select 0, %s5, %s3
  $region1: #{tpu_custom_call.1} parent=0
    #allocation2 [shape = 'u8[1024]{0}', space=vmem, size = 0x400, scoped, tag = 'input window, operand 0, single buffered']
    #allocation3 [shape = 's32[1]{0}', space=sflag, size = 0x4, scoped, tag = 'scoped memory for tpu_custom_call.1']
    #allocation4 [shape = 's32[1]{0}', space=sflag, size = 0x4, scoped, tag = 'scoped memory for tpu_custom_call.1']
    #allocation5 [shape = 'u8[2048]{0}', space=vmem, size = 0x800, scoped, tag = 'input window, operand 1, single buffered']
    #allocation6 [shape = 's32[1]{0}', space=sflag, size = 0x4, scoped, tag = 'scoped memory for tpu_custom_call.1']
    #allocation7 [shape = 'u8[2048]{0}', space=vmem, size = 0x800, scoped, tag = 'output window, operand 0, single buffered']
    %7 = vsyncpa [#allocation3], 0
    %8 = vsyncpa [#allocation6], 0
    %9 = vsyncpa [#allocation4], 0
    // Predicated region
    $region2: #{tpu_custom_call.1} parent=1 // pred_check
      _
    $region3: #{tpu_custom_call.1} parent=1 // pred_check_branch
      %11 = sbr.rel (0) target = $region5
    $region4: #{tpu_custom_call.1} parent=1 // pred_region
      %s13 = ssub.s32 32, 32
      %14 = vsyncadd [#allocation3], %s13
      %s16 = sshll.u32 [#allocation2], 4
      %s17 = int_to_ptr.vmem [resolvable:$true] %s16
      %19 = dma.hbm_to_vmem [thread:$0]  %s0, 32, %s17, [#allocation3]
    $region5: #{tpu_custom_call.1} parent=1 // pred_fallthru
      _
    // Predicated region
    $region6: #{tpu_custom_call.1} parent=1 // pred_check
      _
    $region7: #{tpu_custom_call.1} parent=1 // pred_check_branch
      %21 = sbr.rel (0) target = $region9
    $region8: #{tpu_custom_call.1} parent=1 // pred_region
      %s23 = ssub.s32 64, 64
      %24 = vsyncadd [#allocation6], %s23
      %s26 = sshll.u32 [#allocation5], 4
      %s27 = int_to_ptr.vmem [resolvable:$true] %s26
      %29 = dma.hbm_to_vmem [thread:$0]  %s1, 64, %s27, [#allocation6]
    $region9: #{tpu_custom_call.1} parent=1 // pred_fallthru
      _
    // Predicated region
    $region10: #{tpu_custom_call.1} parent=1 // pred_check
      _
    $region11: #{tpu_custom_call.1} parent=1 // pred_check_branch
      %31 = sbr.rel (0) target = $region13
    $region12: #{tpu_custom_call.1} parent=1 // pred_region
      %32 = dma.done [#allocation3], 32
    $region13: #{tpu_custom_call.1} parent=1 // pred_fallthru
      _
    // Predicated region
    $region14: #{tpu_custom_call.1} parent=1 // pred_check
      _
    $region15: #{tpu_custom_call.1} parent=1 // pred_check_branch
      %34 = sbr.rel (0) target = $region17
    $region16: #{tpu_custom_call.1} parent=1 // pred_region
      %35 = dma.done [#allocation6], 64
    $region17: #{tpu_custom_call.1} parent=1 // pred_fallthru
      _
    %v36 = vld [vmem:[#allocation5] sm:$0xf]
    %v37 = vld [vmem:[#allocation2] sm:$0x1]
    %v38 = vlaneseq
    %v39 = vshrl.u32 %v38, 7
    %v40 = vsub.s32 0, %v39
    %v41 = vrot.slane %v37, %v40
    %v42 = vmul.f32 %v36, %v41
    %v43 = vld [vmem:[#allocation2 + $0x1] sm:$0x1]
    %v44 = vlaneseq
    %v45 = vshrl.u32 %v44, 7
    %v46 = vsub.s32 0, %v45
    %v47 = vrot.slane %v43, %v46
    %v48 = vadd.f32 %v42, %v47
    %49 = vst [vmem:[#allocation7] sm:$0xf] %v48
    // Predicated region
    $region18: #{tpu_custom_call.1} parent=1 // pred_check
      _
    $region19: #{tpu_custom_call.1} parent=1 // pred_check_branch
      %51 = sbr.rel (0) target = $region21
    $region20: #{tpu_custom_call.1} parent=1 // pred_region
      %s53 = ssub.s32 64, 64
      %54 = vsyncadd [#allocation4], %s53
      %s56 = sshll.u32 [#allocation7], 4
      %s57 = int_to_ptr.vmem [resolvable:$true] %s56
      %59 = dma.vmem_to_hbm [thread:$0]  %s57, 64, %s2, [#allocation4]
    $region21: #{tpu_custom_call.1} parent=1 // pred_fallthru
      _
    // Predicated region
    $region22: #{tpu_custom_call.1} parent=1 // pred_check
      _
    $region23: #{tpu_custom_call.1} parent=1 // pred_check_branch
      %61 = sbr.rel (0) target = $region25
    $region24: #{tpu_custom_call.1} parent=1 // pred_region
      %62 = dma.done [#allocation4], 64
    $region25: #{tpu_custom_call.1} parent=1 // pred_fallthru
      _
    %63 = vsyncpa [#allocation3], 1
    %64 = vsyncpa [#allocation6], 1
    %65 = vsyncpa [#allocation4], 1

</llo_original>
